<compile_context>
chip_gen: v7x
topology: tpu7x:2x2x1
jax: 0.10.0
libtpu: 0.0.40
codegen_flags: <defaults>
</compile_context>

<pallas_src>
import jax
import jax.numpy as jnp
from jax.experimental import pallas as pl
from jax.experimental.pallas import tpu as pltpu


def _round_up(x, m):
    return ((x + m - 1) // m) * m


def _sublane_packing(dtype):
    # Rows per packed sublane group: 8 for 4-byte, 16 for 2-byte, 32 for 1-byte.
    return 8 * max(1, 4 // jnp.dtype(dtype).itemsize)


def _default_tn(compute_dtype):
    # Bigger vocab tile for narrow dtypes (half the W bytes per tile); sized so
    # double-buffered W + out tiles stay well inside v7x's 64 MiB/TC VMEM.
    return 4096 if jnp.dtype(compute_dtype).itemsize <= 2 else 2048


def _tile_sizes(M, d_model, d_vocab, tm, tn, tk_max, compute_dtype):
    if tn is None:
        tn = _default_tn(compute_dtype)
    tn = min(tn, _round_up(d_vocab, 128))                       # lane multiple
    tm = min(tm, _round_up(M, _sublane_packing(compute_dtype)))  # sublane packing
    # Whole d_model in one K step when it fits (Pythia: 768 <= 1024 -> nk == 1);
    # otherwise a 128-multiple chunk with an f32 accumulator across k.
    tk = d_model if d_model <= tk_max else tk_max  # tk_max must be a 128 multiple
    return tm, tn, tk


def prepare_unembed_params(W_U, b_U, *, tn=None, tk_max=1024,
                           compute_dtype=jnp.bfloat16):
    """Cast / pad the unembedding weights ONCE, outside the hot path.

    Returns (W_prepared, b_prepared) that `unembed` consumes without any
    further full-weight copies.  Pass the logical d_vocab to `unembed`.
    """
    d_model, d_vocab = W_U.shape
    if tn is None:
        tn = _default_tn(compute_dtype)
    tn = min(tn, _round_up(d_vocab, 128))
    tk = d_model if d_model <= tk_max else tk_max
    K_pad = _round_up(d_model, tk)
    N_pad = _round_up(d_vocab, tn)

    W = W_U.astype(compute_dtype)
    if (K_pad, N_pad) != (d_model, d_vocab):
        # K padding must be exact zeros (it feeds the reduction); N padding is
        # sliced off after the kernel.
        W = jnp.pad(W, ((0, K_pad - d_model), (0, N_pad - d_vocab)))
    b = b_U.reshape(1, d_vocab).astype(jnp.float32)
    if N_pad != d_vocab:
        b = jnp.pad(b, ((0, 0), (0, N_pad - d_vocab)))
    return W, b


def _unembed_kernel_fused(x_ref, w_ref, b_ref, o_ref):
    # nk == 1: single K step -> no accumulator scratch, no zero-fill, no
    # read-modify-write.  One MXU dot (f32 accumulation) + bias + store.
    o_ref[...] = (
        jnp.dot(x_ref[...], w_ref[...], preferred_element_type=jnp.float32)
        + b_ref[...].astype(jnp.float32)
    ).astype(o_ref.dtype)


def _unembed_kernel_acc(x_ref, w_ref, b_ref, o_ref, acc_ref):
    # General K reduction: f32 accumulator resident across the innermost k axis.
    k = pl.program_id(2)
    prod = jnp.dot(x_ref[...], w_ref[...], preferred_element_type=jnp.float32)

    @pl.when(k == 0)
    def _init():
        acc_ref[...] = prod          # direct assign (no zero-fill + add)

    @pl.when(k != 0)
    def _accum():
        acc_ref[...] += prod

    @pl.when(k == pl.num_programs(2) - 1)
    def _finalize():
        o_ref[...] = (acc_ref[...] + b_ref[...].astype(jnp.float32)).astype(o_ref.dtype)


def unembed(
    x,
    W_U,
    b_U,
    *,
    d_vocab=None,
    tm=256,
    tn=None,
    tk_max=1024,
    out_dtype=None,
    compute_dtype=jnp.bfloat16,
    vmem_limit_bytes=48 * 1024 * 1024,
):
    """x: [batch, pos, d_model]; W_U: [d_model, d_vocab]; b_U: [d_vocab].

    W_U / b_U may be the raw module parameters (convenience path: they get
    cast/padded here, a full-weight copy) or the output of
    `prepare_unembed_params` (hot path: no weight copies; pass logical
    d_vocab).  compute_dtype=jnp.float32 gives strict PyTorch-f32 parity;
    out_dtype=jnp.bfloat16 is a documented fast path for large-M logits.
    """
    batch, pos, d_model = x.shape
    if d_vocab is None:
        d_vocab = W_U.shape[1]
    out_dtype = x.dtype if out_dtype is None else out_dtype

    M = batch * pos
    tm, tn, tk = _tile_sizes(M, d_model, d_vocab, tm, tn, tk_max, compute_dtype)
    M_pad = _round_up(M, tm)
    N_pad = _round_up(d_vocab, tn)
    K_pad = _round_up(d_model, tk)
    ni, nj, nk = M_pad // tm, N_pad // tn, K_pad // tk

    # --- weights: use pre-prepared buffers if they match, else prepare now ---
    already_prepared = (
        W_U.shape == (K_pad, N_pad)
        and W_U.dtype == jnp.dtype(compute_dtype)
        and b_U.ndim == 2
        and b_U.shape == (1, N_pad)
        and b_U.dtype == jnp.dtype(jnp.float32)
    )
    if already_prepared:
        W, b2d = W_U, b_U
    else:
        # Convenience path only: full-weight cast/pad per call.  For hot loops
        # call prepare_unembed_params once and reuse the result.
        W, b2d = prepare_unembed_params(
            W_U, b_U, tn=tn, tk_max=tk_max, compute_dtype=compute_dtype
        )

    # --- activations (small): cast + pad ------------------------------------
    x2d = x.reshape(M, d_model).astype(compute_dtype)
    if M_pad != M or K_pad != d_model:
        x2d = jnp.pad(x2d, ((0, M_pad - M), (0, K_pad - d_model)))

    cost = pl.CostEstimate(
        flops=2 * M * d_model * d_vocab,
        transcendentals=0,
        bytes_accessed=(
            x2d.size * x2d.dtype.itemsize
            + W.size * W.dtype.itemsize
            + b2d.size * b2d.dtype.itemsize
            + M * d_vocab * jnp.dtype(out_dtype).itemsize
        ),
    )

    if nk == 1:
        # Vocab-outer / rows-inner grid: W block index constant across the
        # inner i loop (streamed from HBM once); leading parallel axis = vocab
        # so the v7x megacore splits decode work across its 2 TensorCores.
        out2d = pl.pallas_call(
            _unembed_kernel_fused,
            out_shape=jax.ShapeDtypeStruct((M_pad, N_pad), out_dtype),
            grid_spec=pltpu.PrefetchScalarGridSpec(
                num_scalar_prefetch=0,
                grid=(nj, ni),
                in_specs=[
                    pl.BlockSpec((tm, tk), lambda j, i: (i, 0)),
                    pl.BlockSpec((tk, tn), lambda j, i: (0, j)),
                    pl.BlockSpec((1, tn), lambda j, i: (0, j)),
                ],
                out_specs=pl.BlockSpec((tm, tn), lambda j, i: (i, j)),
            ),
            compiler_params=pltpu.CompilerParams(
                dimension_semantics=("parallel", "parallel"),
                vmem_limit_bytes=vmem_limit_bytes,
            ),
            cost_estimate=cost,
        )(x2d, W, b2d)
    else:
        # Large d_model: k is the innermost grid axis so the f32 accumulator
        # stays resident across the reduction.
        out2d = pl.pallas_call(
            _unembed_kernel_acc,
            out_shape=jax.ShapeDtypeStruct((M_pad, N_pad), out_dtype),
            grid_spec=pltpu.PrefetchScalarGridSpec(
                num_scalar_prefetch=0,
                grid=(nj, ni, nk),
                in_specs=[
                    pl.BlockSpec((tm, tk), lambda j, i, k: (i, k)),
                    pl.BlockSpec((tk, tn), lambda j, i, k: (k, j)),
                    pl.BlockSpec((1, tn), lambda j, i, k: (0, j)),
                ],
                out_specs=pl.BlockSpec((tm, tn), lambda j, i, k: (i, j)),
                scratch_shapes=[pltpu.VMEM((tm, tn), jnp.float32)],
            ),
            compiler_params=pltpu.CompilerParams(
                dimension_semantics=("parallel", "parallel", "arbitrary"),
                vmem_limit_bytes=vmem_limit_bytes,
            ),
            cost_estimate=cost,
        )(x2d, W, b2d)

    if M_pad != M or N_pad != d_vocab:
        out2d = out2d[:M, :d_vocab]
    return out2d.reshape(batch, pos, d_vocab)


if __name__ == "__main__":
    # Small config consistent with the module (d_model / d_vocab scaled down);
    # intentionally NOT tile-aligned to exercise the padding path
    # (real Pythia: d_model=768, d_vocab=50304).
    batch, pos, d_model, d_vocab = 2, 8, 48, 320
    init_range = 0.02

    key = jax.random.PRNGKey(0)
    kx, kw = jax.random.split(key)

    x = jax.random.normal(kx, (batch, pos, d_model), dtype=jnp.float32)
    # Deterministic parameter init mirroring nn.init.normal_(std=init_range).
    W_U = init_range * jax.random.normal(kw, (d_model, d_vocab), dtype=jnp.float32)
    b_U = jnp.zeros((d_vocab,), dtype=jnp.float32)  # requires_grad=False, zeros

    ref = (
        jnp.einsum("bpd,dv->bpv", x, W_U, precision=jax.lax.Precision.HIGHEST)
        + b_U
    )

    # 1) Strict f32-parity path (matches the PyTorch module's f32 numerics).
    logits_f32 = unembed(x, W_U, b_U, compute_dtype=jnp.float32)
    jax.block_until_ready(logits_f32)
    assert logits_f32.shape == (batch, pos, d_vocab)
    assert jnp.allclose(logits_f32, ref, atol=1e-4, rtol=1e-4)

    # 2) Default fast path: bf16-streamed W_U (f32 MXU accumulation), weights
    #    prepared once outside the hot path (no per-call jnp.pad of W_U).
    W_p, b_p = prepare_unembed_params(W_U, b_U)
    logits_bf16 = unembed(x, W_p, b_p, d_vocab=d_vocab)
    jax.block_until_ready(logits_bf16)
    assert logits_bf16.shape == (batch, pos, d_vocab)
    assert jnp.allclose(logits_bf16, ref, atol=2e-2, rtol=2e-2)

    # 3) Multi-step K reduction path (d_model > tk_max -> accumulator kernel).
    d_model2 = 320
    x2 = jax.random.normal(kx, (batch, pos, d_model2), dtype=jnp.float32)
    W2 = init_range * jax.random.normal(kw, (d_model2, d_vocab), dtype=jnp.float32)
    ref2 = (
        jnp.einsum("bpd,dv->bpv", x2, W2, precision=jax.lax.Precision.HIGHEST)
        + b_U
    )
    logits_acc = unembed(x2, W2, b_U, tk_max=128, compute_dtype=jnp.float32)
    jax.block_until_ready(logits_acc)
    assert logits_acc.shape == (batch, pos, d_vocab)
    assert jnp.allclose(logits_acc, ref2, atol=1e-4, rtol=1e-4)

    print("KERNEL_OK")
</pallas_src>

<mosaic_0001>
module attributes {stable_mosaic.version = 11 : i64} {
  func.func @_unembed_kernel_fused(%arg0: i32, %arg1: i32, %arg2: memref<16x48xf32, #tpu.memory_space<vmem>>, %arg3: memref<48x384xf32, #tpu.memory_space<vmem>>, %arg4: memref<1x384xf32, #tpu.memory_space<vmem>>, %arg5: memref<16x384xf32, #tpu.memory_space<vmem>>) attributes {dimension_semantics = [#tpu.dimension_semantics<parallel>, #tpu.dimension_semantics<parallel>], iteration_bounds = array<i64: 1, 1>, scalar_prefetch = 0 : i64, scratch_operands = 0 : i64, tpu.core_type = #tpu.core_type<tc>, window_params = [{transform_indices = @transform_0, window_bounds = array<i64: 16, 48>}, {transform_indices = @transform_1, window_bounds = array<i64: 48, 384>}, {transform_indices = @transform_2, window_bounds = array<i64: 1, 384>}, {transform_indices = @transform_3, window_bounds = array<i64: 16, 384>}]} {
    %c0 = arith.constant 0 : index
    %c0_0 = arith.constant 0 : index
    %0 = vector.load %arg2[%c0, %c0_0] : memref<16x48xf32, #tpu.memory_space<vmem>>, vector<16x48xf32>
    %c0_1 = arith.constant 0 : index
    %c0_2 = arith.constant 0 : index
    %1 = vector.load %arg3[%c0_1, %c0_2] : memref<48x384xf32, #tpu.memory_space<vmem>>, vector<48x384xf32>
    %cst = arith.constant dense<0.000000e+00> : vector<16x384xf32>
    %2 = tpu.matmul %0, %1, %cst {dimension_numbers = #tpu.dot_dimension_numbers<[1], [0], [0], [1], [0, 0, 1, 1], [], []>} : vector<16x48xf32>, vector<48x384xf32>, vector<16x384xf32> -> vector<16x384xf32>
    %c0_3 = arith.constant 0 : index
    %c0_4 = arith.constant 0 : index
    %3 = vector.load %arg4[%c0_3, %c0_4] : memref<1x384xf32, #tpu.memory_space<vmem>>, vector<1x384xf32>
    %4 = vector.broadcast %3 : vector<1x384xf32> to vector<16x384xf32>
    %5 = arith.addf %2, %4 : vector<16x384xf32>
    %c0_5 = arith.constant 0 : index
    %c0_6 = arith.constant 0 : index
    %6 = vector.load %arg5[%c0_5, %c0_6] : memref<16x384xf32, #tpu.memory_space<vmem>>, vector<16x384xf32>
    tpu.vector_store %arg5[%c0_5, %c0_6], %5 {strides = array<i32>} : memref<16x384xf32, #tpu.memory_space<vmem>>, vector<16x384xf32>,
    return
  }
  func.func @transform_0(%arg0: i32, %arg1: i32) -> (i32, i32) {
    %c0_i32 = arith.constant 0 : i32
    %c0_i32_0 = arith.constant 0 : i32
    return %arg1, %c0_i32 : i32, i32
  }
  func.func @transform_1(%arg0: i32, %arg1: i32) -> (i32, i32) {
    %c0_i32 = arith.constant 0 : i32
    %c0_i32_0 = arith.constant 0 : i32
    return %c0_i32, %arg0 : i32, i32
  }
  func.func @transform_2(%arg0: i32, %arg1: i32) -> (i32, i32) {
    %c0_i32 = arith.constant 0 : i32
    %c0_i32_0 = arith.constant 0 : i32
    return %c0_i32, %arg0 : i32, i32
  }
  func.func @transform_3(%arg0: i32, %arg1: i32) -> (i32, i32) {
    %c0_i32 = arith.constant 0 : i32
    return %arg1, %arg0 : i32, i32
  }
}

</mosaic_0001>

<llo_original>
// kernel: tpu_custom_call.1
$region0: #{tpu_custom_call.1}
  #allocation0 [shape = 'u32[]', space=smem, size = 0x4, offset = 0x4, fixed_abs, tag = 'smem constant byte address 0x4 - core index']
  #allocation1 [shape = 'u32[144,128]{1,0:T(1,128)}', space=vmem, size = 0x12000, scoped, tag = 'internal scratch']
  %s0 = inlined_call_operand.hbm [shape: f32[16,48], index: 0, kind: input, shape index: {}]
  %s1 = inlined_call_operand.hbm [shape: f32[48,384], index: 1, kind: input, shape index: {}]
  %s2 = inlined_call_operand.vmem [shape: f32[1,384], index: 2, kind: input, shape index: {}]
  %s3 = inlined_call_operand.hbm [shape: f32[16,384], index: 3, kind: output, shape index: {}]
  %s4 = sld [smem:[#allocation0]]
  $region30: #{tpu_custom_call.1} parent=0
    _
  %s6 = ssub.s32 1, %s4
  %s7 = scalar_select 0, %s6, %s4
  $region1: #{tpu_custom_call.1} parent=0
    #allocation2 [shape = 'u8[8192]{0}', space=vmem, size = 0x2000, scoped, tag = 'input window, operand 0, single buffered']
    #allocation3 [shape = 's32[1]{0}', space=sflag, size = 0x4, scoped, tag = 'scoped memory for tpu_custom_call.1']
    #allocation4 [shape = 's32[1]{0}', space=sflag, size = 0x4, scoped, tag = 'scoped memory for tpu_custom_call.1']
    #allocation5 [shape = 'u8[73728]{0}', space=vmem, size = 0x12000, scoped, tag = 'input window, operand 1, single buffered']
    #allocation6 [shape = 's32[1]{0}', space=sflag, size = 0x4, scoped, tag = 'scoped memory for tpu_custom_call.1']
    #allocation7 [shape = 'u8[24576]{0}', space=vmem, size = 0x6000, scoped, tag = 'output window, operand 0, single buffered']
    %8 = vsyncpa [#allocation3], 0
    %9 = vsyncpa [#allocation6], 0
    %10 = vsyncpa [#allocation4], 0
    // Predicated region
    $region2: #{tpu_custom_call.1} parent=1 // pred_check
      _
    $region3: #{tpu_custom_call.1} parent=1 // pred_check_branch
      %12 = sbr.rel (0) target = $region5
    $region4: #{tpu_custom_call.1} parent=1 // pred_region
      %s14 = ssub.s32 256, 256
      %15 = vsyncadd [#allocation3], %s14
      %s16 = sshll.u32 [#allocation2], 4
      %s17 = int_to_ptr.vmem [resolvable:$true] %s16
      %22 = dma.hbm_to_vmem [thread:$0]  %s0, 256, %s17, [#allocation3], 128, 128, 8
    $region5: #{tpu_custom_call.1} parent=1 // pred_fallthru
      _
    // Predicated region
    $region6: #{tpu_custom_call.1} parent=1 // pred_check
      _
    $region7: #{tpu_custom_call.1} parent=1 // pred_check_branch
      %24 = sbr.rel (0) target = $region9
    $region8: #{tpu_custom_call.1} parent=1 // pred_region
      %s26 = ssub.s32 2304, 2304
      %27 = vsyncadd [#allocation6], %s26
      %s28 = sshll.u32 [#allocation5], 4
      %s29 = int_to_ptr.vmem [resolvable:$true] %s28
      %34 = dma.hbm_to_vmem [thread:$0]  %s1, 2304, %s29, [#allocation6], 384, 384, 24
    $region9: #{tpu_custom_call.1} parent=1 // pred_fallthru
      _
    // Predicated region
    $region10: #{tpu_custom_call.1} parent=1 // pred_check
      _
    $region11: #{tpu_custom_call.1} parent=1 // pred_check_branch
      %36 = sbr.rel (0) target = $region13
    $region12: #{tpu_custom_call.1} parent=1 // pred_region
      _
    $region13: #{tpu_custom_call.1} parent=1 // pred_fallthru
      _
    // Predicated region
    $region14: #{tpu_custom_call.1} parent=1 // pred_check
      _
    $region15: #{tpu_custom_call.1} parent=1 // pred_check_branch
      %38 = sbr.rel (0) target = $region17
    $region16: #{tpu_custom_call.1} parent=1 // pred_region
      %39 = dma.done [#allocation3], 256
    $region17: #{tpu_custom_call.1} parent=1 // pred_fallthru
      _
    // Predicated region
    $region18: #{tpu_custom_call.1} parent=1 // pred_check
      _
    $region19: #{tpu_custom_call.1} parent=1 // pred_check_branch
      %41 = sbr.rel (0) target = $region21
    $region20: #{tpu_custom_call.1} parent=1 // pred_region
      %42 = dma.done [#allocation6], 2304
    $region21: #{tpu_custom_call.1} parent=1 // pred_fallthru
      _
    %v43 = vld [vmem:[#allocation2] sm:$0xff]
    %v44 = vld [vmem:[#allocation2 + $0x8] sm:$0xff]
    %v45 = vld [vmem:[#allocation5] sm:$0xff]
    %v46 = vld [vmem:[#allocation5 + $0x8] sm:$0xff]
    %v47 = vld [vmem:[#allocation5 + $0x10] sm:$0xff]
    %v48 = vld [vmem:[#allocation5 + $0x18] sm:$0xff]
    %v49 = vld [vmem:[#allocation5 + $0x20] sm:$0xff]
    %v50 = vld [vmem:[#allocation5 + $0x28] sm:$0xff]
    %v51 = vld [vmem:[#allocation5 + $0x30] sm:$0xff]
    %v52 = vld [vmem:[#allocation5 + $0x38] sm:$0xff]
    %v53 = vld [vmem:[#allocation5 + $0x40] sm:$0xff]
    %v54 = vld [vmem:[#allocation5 + $0x48] sm:$0xff]
    %v55 = vld [vmem:[#allocation5 + $0x50] sm:$0xff]
    %v56 = vld [vmem:[#allocation5 + $0x58] sm:$0xff]
    %v57 = vld [vmem:[#allocation5 + $0x60] sm:$0xff]
    %v58 = vld [vmem:[#allocation5 + $0x68] sm:$0xff]
    %v59 = vld [vmem:[#allocation5 + $0x70] sm:$0xff]
    %v60 = vld [vmem:[#allocation5 + $0x78] sm:$0xff]
    %v61 = vld [vmem:[#allocation5 + $0x80] sm:$0xff]
    %v62 = vld [vmem:[#allocation5 + $0x88] sm:$0xff]
    %v63 = vld [vmem:[%s2] sm:$0x7]
    %v65 = vlaneseq
    %v66 = vshrl.u32 %v65, 7
    %v67 = vsub.s32 0, %v66
    %v68 = vrot.slane %v63, %v67
    %v69 = vlaneseq
    %v70 = vshrl.u32 %v69, 7
    %v71 = vsub.s32 1, %v70
    %v72 = vrot.slane %v63, %v71
    %v73 = vlaneseq
    %v74 = vshrl.u32 %v73, 7
    %v75 = vsub.s32 2, %v74
    %v76 = vrot.slane %v63, %v75
    %vm80 = vcmask 392192
    %v82 = vsel %vm80, %v43, 0
    %v85 = vsel %vm80, %v44, 0
    %87 = vmatprep.subr.mxu0 %v46
    %88 = vmatpush1.msra.mxu0 %v45
    %89 = vmatprep.subr.mxu0 %v49
    %90 = vmatpush1.msra.mxu0 %v48
    %91 = vmatprep.subr.mxu0 %v52
    %92 = vmatpush1.msra.mxu0 %v51
    %93 = vmatprep.subr.mxu0 %v55
    %94 = vmatpush1.msra.mxu0 %v54
    %95 = vmatprep.subr.mxu0 %v58
    %96 = vmatpush1.msra.mxu0 %v57
    %97 = vmatprep.subr.mxu0 %v61
    %98 = vmatpush1.msra.mxu0 %v60
    %99 = vmatprep.subr.mxu0 0.0
    %100 = vmatpush1.msra.mxu0 0.0
    %101 = vmatprep.subr.mxu0 0.0
    %102 = vmatpush1.msra.mxu0 0.0
    %103 = vmatprep.subr.mxu0 0.0
    %104 = vmatpush1.msra.mxu0 0.0
    %105 = vmatprep.subr.mxu0 0.0
    %106 = vmatpush1.msra.mxu0 0.0
    %107 = vmatprep.subr.mxu0 0.0
    %108 = vmatpush1.msra.mxu0 0.0
    %109 = vmatprep.subr.mxu0 0.0
    %110 = vmatpush1.msra.mxu0 0.0
    %111 = vmatprep.subr.mxu0 0.0
    %112 = vmatpush1.msra.mxu0 0.0
    %113 = vmatprep.subr.mxu0 0.0
    %114 = vmatpush1.msra.mxu0 0.0
    %115 = vmatprep.subr.mxu0 0.0
    %116 = vmatpush1.msra.mxu0 0.0
    %117 = vmatprep.subr.mxu0 0.0
    %118 = vmatpush1.msra.mxu0 0.0
    %119 = vmatprep.subr.mxu0 0.0
    %120 = vmatpush1.msra.mxu0 0.0
    %121 = vmatprep.subr.mxu0 0.0
    %122 = vmatpush1.msra.mxu0 0.0
    %123 = vmatprep.subr.mxu0 0.0
    %124 = vmatpush1.msra.mxu0 0.0
    %125 = vmatprep.subr.mxu0 0.0
    %126 = vmatpush1.msra.mxu0 0.0
    %127 = vmatprep.subr.mxu0 0.0
    %128 = vmatpush1.msra.mxu0 0.0
    %129 = vmatprep.subr.mxu0 0.0
    %130 = vmatpush1.msra.mxu0 0.0
    %131 = vmatprep.subr.mxu0 0.0
    %132 = vmatpush1.msra.mxu0 0.0
    %133 = vmatprep.subr.mxu0 0.0
    %134 = vmatpush1.msra.mxu0 0.0
    %135 = vmatprep.subr.mxu0 0.0
    %136 = vmatpush1.msra.mxu0 0.0
    %137 = vmatprep.subr.mxu0 0.0
    %138 = vmatpush1.msra.mxu0 0.0
    %139 = vmatprep.subr.mxu0 0.0
    %140 = vmatpush1.msra.mxu0 0.0
    %141 = vmatprep.subr.mxu0 0.0
    %142 = vmatpush1.msra.mxu0 0.0
    %143 = vmatprep.subr.mxu0 0.0
    %144 = vmatpush1.msra.mxu0 0.0
    %145 = vmatprep.subr.mxu0 0.0
    %146 = vmatpush1.msra.mxu0 0.0
    %147 = vmatprep.subr.mxu0 0.0
    %148 = vmatpush1.msra.mxu0 0.0
    %149 = vmatprep.subr.mxu0 0.0
    %150 = vmatpush1.msra.mxu0 0.0
    %151 = vmatprep.mubr.f32.mxu0 0.0
    %152 = vmatmul.mubr.f32.gmra.mrb[0].mxu0 %v82
    %v153 = vpop.f32.mrb[0].mxu0
    %v154 = vadd.f32 %v68, %v153
    %v155 = vpop.f32.mrb[0].mxu0
    %v156 = vadd.f32 %v72, %v155
    %157 = vmatprep.mubr.f32.mxu0 0.0
    %158 = vmatmul.mubr.f32.gmra.mrb[0].mxu0 %v85
    %v159 = vpop.f32.mrb[0].mxu0
    %v160 = vadd.f32 %v68, %v159
    %v161 = vpop.f32.mrb[0].mxu0
    %v162 = vadd.f32 %v72, %v161
    %163 = vdwg.mxu0
    %164 = vmatprep.subr.mxu0 0.0
    %165 = vmatpush1.msra.mxu0 %v47
    %166 = vmatprep.subr.mxu0 0.0
    %167 = vmatpush1.msra.mxu0 %v50
    %168 = vmatprep.subr.mxu0 0.0
    %169 = vmatpush1.msra.mxu0 %v53
    %170 = vmatprep.subr.mxu0 0.0
    %171 = vmatpush1.msra.mxu0 %v56
    %172 = vmatprep.subr.mxu0 0.0
    %173 = vmatpush1.msra.mxu0 %v59
    %174 = vmatprep.subr.mxu0 0.0
    %175 = vmatpush1.msra.mxu0 %v62
    %176 = vmatprep.subr.mxu0 0.0
    %177 = vmatpush1.msra.mxu0 0.0
    %178 = vmatprep.subr.mxu0 0.0
    %179 = vmatpush1.msra.mxu0 0.0
    %180 = vmatprep.subr.mxu0 0.0
    %181 = vmatpush1.msra.mxu0 0.0
    %182 = vmatprep.subr.mxu0 0.0
    %183 = vmatpush1.msra.mxu0 0.0
    %184 = vmatprep.subr.mxu0 0.0
    %185 = vmatpush1.msra.mxu0 0.0
    %186 = vmatprep.subr.mxu0 0.0
    %187 = vmatpush1.msra.mxu0 0.0
    %188 = vmatprep.subr.mxu0 0.0
    %189 = vmatpush1.msra.mxu0 0.0
    %190 = vmatprep.subr.mxu0 0.0
    %191 = vmatpush1.msra.mxu0 0.0
    %192 = vmatprep.subr.mxu0 0.0
    %193 = vmatpush1.msra.mxu0 0.0
    %194 = vmatprep.subr.mxu0 0.0
    %195 = vmatpush1.msra.mxu0 0.0
    %196 = vmatprep.subr.mxu0 0.0
    %197 = vmatpush1.msra.mxu0 0.0
    %198 = vmatprep.subr.mxu0 0.0
    %199 = vmatpush1.msra.mxu0 0.0
    %200 = vmatprep.subr.mxu0 0.0
    %201 = vmatpush1.msra.mxu0 0.0
    %202 = vmatprep.subr.mxu0 0.0
    %203 = vmatpush1.msra.mxu0 0.0
    %204 = vmatprep.subr.mxu0 0.0
    %205 = vmatpush1.msra.mxu0 0.0
    %206 = vmatprep.subr.mxu0 0.0
    %207 = vmatpush1.msra.mxu0 0.0
    %208 = vmatprep.subr.mxu0 0.0
    %209 = vmatpush1.msra.mxu0 0.0
    %210 = vmatprep.subr.mxu0 0.0
    %211 = vmatpush1.msra.mxu0 0.0
    %212 = vmatprep.subr.mxu0 0.0
    %213 = vmatpush1.msra.mxu0 0.0
    %214 = vmatprep.subr.mxu0 0.0
    %215 = vmatpush1.msra.mxu0 0.0
    %216 = vmatprep.subr.mxu0 0.0
    %217 = vmatpush1.msra.mxu0 0.0
    %218 = vmatprep.subr.mxu0 0.0
    %219 = vmatpush1.msra.mxu0 0.0
    %220 = vmatprep.subr.mxu0 0.0
    %221 = vmatpush1.msra.mxu0 0.0
    %222 = vmatprep.subr.mxu0 0.0
    %223 = vmatpush1.msra.mxu0 0.0
    %224 = vmatprep.subr.mxu0 0.0
    %225 = vmatpush1.msra.mxu0 0.0
    %226 = vmatprep.subr.mxu0 0.0
    %227 = vmatpush1.msra.mxu0 0.0
    %228 = vmatprep.mubr.f32.mxu0 0.0
    %229 = vmatmul.mubr.f32.gmra.mrb[0].mxu0 %v82
    %v230 = vpop.f32.mrb[0].mxu0
    %v231 = vadd.f32 %v76, %v230
    %v232 = vpop.f32.mrb[0].mxu0
    %233 = vmatprep.mubr.f32.mxu0 0.0
    %234 = vmatmul.mubr.f32.gmra.mrb[0].mxu0 %v85
    %v235 = vpop.f32.mrb[0].mxu0
    %v236 = vadd.f32 %v76, %v235
    %v237 = vpop.f32.mrb[0].mxu0
    %238 = vdwg.mxu0
    %239 = vst [vmem:[#allocation7] sm:$0xff] %v154
    %240 = vst [vmem:[#allocation7 + $0x8] sm:$0xff] %v156
    %241 = vst [vmem:[#allocation7 + $0x10] sm:$0xff] %v231
    %242 = vst [vmem:[#allocation7 + $0x18] sm:$0xff] %v160
    %243 = vst [vmem:[#allocation7 + $0x20] sm:$0xff] %v162
    %244 = vst [vmem:[#allocation7 + $0x28] sm:$0xff] %v236
    // Predicated region
    $region22: #{tpu_custom_call.1} parent=1 // pred_check
      _
    $region23: #{tpu_custom_call.1} parent=1 // pred_check_branch
      %246 = sbr.rel (0) target = $region25
    $region24: #{tpu_custom_call.1} parent=1 // pred_region
      %s248 = ssub.s32 768, 768
      %249 = vsyncadd [#allocation4], %s248
      %s250 = sshll.u32 [#allocation7], 4
      %s251 = int_to_ptr.vmem [resolvable:$true] %s250
      %256 = dma.vmem_to_hbm [thread:$0]  %s251, 768, %s3, [#allocation4], 384, 384, 24
    $region25: #{tpu_custom_call.1} parent=1 // pred_fallthru
      _
    // Predicated region
    $region26: #{tpu_custom_call.1} parent=1 // pred_check
      _
    $region27: #{tpu_custom_call.1} parent=1 // pred_check_branch
      %258 = sbr.rel (0) target = $region29
    $region28: #{tpu_custom_call.1} parent=1 // pred_region
      %259 = dma.done [#allocation4], 768
    $region29: #{tpu_custom_call.1} parent=1 // pred_fallthru
      _
    %260 = vsyncpa [#allocation3], 1
    %261 = vsyncpa [#allocation6], 1
    %262 = vsyncpa [#allocation4], 1

</llo_original>
